<compile_context>
chip_gen: v7x
topology: tpu7x:2x2x1
jax: 0.10.0
libtpu: 0.0.40
codegen_flags: <defaults>
</compile_context>

<pallas_src>
import functools

import numpy as np
import jax
import jax.numpy as jnp
from jax import lax
from jax.experimental import pallas as pl
from jax.experimental.pallas import tpu as pltpu


def _round_up(x, m):
    return ((x + m - 1) // m) * m


# ---------------------------------------------------------------------------
# Pass 1: row-wise L2 normalization (matches F.normalize(x, p=2, dim=1):
# x / max(||x||, 1e-12) == x * rsqrt(max(||x||^2, 1e-24))).
# Padded (all-zero) rows stay exactly zero, which pass 2 relies on.
def _normalize_kernel(x_ref, o_ref):
    x = x_ref[...].astype(jnp.float32)
    inv = lax.rsqrt(jnp.maximum(jnp.sum(x * x, axis=1, keepdims=True), 1e-24))
    o_ref[...] = (x * inv).astype(o_ref.dtype)


# ---------------------------------------------------------------------------
# Pass 2: one (tb, tb) Gram tile per grid step over the upper triangle of
# tile pairs.  Emits lane-dense per-tile partials; no cross-step state.
def _opl_tile_kernel(
    row_ref, col_ref,        # scalar prefetch: 1-D int32 tile-pair tables (SMEM)
    fi_ref, fj_ref,          # (tb, D) pre-normalized row / col feature tiles
    li_ref,                  # (tb, 1) int32 row labels
    lj_ref,                  # (1, tb) int32 col labels (pre-transposed in wrapper)
    out_ref,                 # (1, 8, tb) f32: sublanes 0/1/2 = pos_sum/neg_sum/pos_cnt
    *, batch, tile_b, needs_pad,
):
    t = pl.program_id(0)
    i = row_ref[t]
    j = col_ref[t]
    is_diag = i == j

    # Gram tile on the MXU, contracting the feature dim of both operands
    # (no explicit transpose); bf16 inputs, f32 accumulation.
    dot = lax.dot_general(
        fi_ref[...], fj_ref[...],
        dimension_numbers=(((1,), (1,)), ((), ())),
        preferred_element_type=jnp.float32,
    )  # (tb, tb) f32

    # Same-label mask: pure broadcast compare, no in-kernel transpose.
    same = li_ref[...] == lj_ref[...]
    ii = lax.broadcasted_iota(jnp.int32, (tile_b, tile_b), 0)
    jj = lax.broadcasted_iota(jnp.int32, (tile_b, tile_b), 1)
    off_diag = jnp.logical_or(ii != jj, jnp.logical_not(is_diag))
    pos_mask = jnp.logical_and(same, off_diag)

    # Padded rows are exactly zero after normalization -> their dot products
    # contribute 0 to both sums; only the positive-pair COUNT needs validity
    # masking.  Reduce only along the sublane axis -> 128-lane partials.
    pos_lanes = jnp.sum(jnp.where(pos_mask, dot, 0.0), axis=0, keepdims=True)
    neg_lanes = jnp.sum(jnp.where(same, 0.0, dot), axis=0, keepdims=True)
    if needs_pad:
        valid = jnp.logical_and(ii + i * tile_b < batch,
                                jj + j * tile_b < batch)
        cnt_src = jnp.where(jnp.logical_and(pos_mask, valid), 1.0, 0.0)
    else:
        cnt_src = jnp.where(pos_mask, 1.0, 0.0)
    cnt_lanes = jnp.sum(cnt_src, axis=0, keepdims=True)

    # Only the upper triangle of tile pairs is visited; off-diagonal tiles
    # also stand in for their symmetric mirror image.
    w = jnp.where(is_diag, jnp.float32(1.0), jnp.float32(2.0))
    packed = jnp.concatenate(
        [pos_lanes, neg_lanes, cnt_lanes,
         jnp.zeros((5, tile_b), jnp.float32)], axis=0) * w
    out_ref[...] = packed[None]


def orthogonal_projection_loss(features, labels, gamma=0.5, tile_b=512,
                               norm_dtype=jnp.bfloat16):
    """Pallas equivalent of OrthogonalProjectionLoss(gamma).forward(features, labels).

    `labels` is assumed integer-valued (as in the reference training loop).
    `norm_dtype` is the storage/MXU dtype of the normalized features
    (bf16 default; pass jnp.float32 for bit-tighter results).
    """
    B, D = features.shape
    labels_col = labels.reshape(B, 1).astype(jnp.int32)

    # ---- pick a 128-aligned tile that fits the per-generation VMEM budget.
    try:
        vmem_cap = int(pltpu.get_tpu_info().vmem_capacity_bytes)
    except Exception:
        vmem_cap = 64 << 20          # conservative default (v7x)
    vmem_limit = int(min(vmem_cap - (4 << 20), 112 << 20))
    budget = int(vmem_limit * 0.6)
    nb = jnp.dtype(norm_dtype).itemsize

    def _est(tb_):
        # fi/fj double-buffered + Gram-tile / mask intermediates + slack
        return 4 * tb_ * D * nb + 6 * tb_ * tb_ * 4 + (1 << 20)

    tb = max(128, _round_up(int(tile_b), 128))
    while tb > 128 and _est(tb) > budget:
        tb -= 128

    B8 = _round_up(B, 8)
    if B8 <= tb:
        tb = B8                      # single tile: blocks equal full array dims
    Bp = _round_up(B, tb)
    nt = Bp // tb
    needs_pad = Bp != B

    feats = features
    if needs_pad:
        feats = jnp.pad(feats, ((0, Bp - B), (0, 0)))            # zero rows
        labels_col = jnp.pad(labels_col, ((0, Bp - B), (0, 0)))
    labels_row = labels_col.reshape(1, Bp)                       # pre-transposed

    # ---- pass 1: normalize once.
    rt = 128 if tb % 128 == 0 else Bp
    feat_norm = pl.pallas_call(
        _normalize_kernel,
        out_shape=jax.ShapeDtypeStruct((Bp, D), norm_dtype),
        grid_spec=pltpu.PrefetchScalarGridSpec(
            num_scalar_prefetch=0,
            grid=(Bp // rt,),
            in_specs=[pl.BlockSpec((rt, D), lambda r: (r, 0))],
            out_specs=pl.BlockSpec((rt, D), lambda r: (r, 0)),
        ),
        compiler_params=pltpu.CompilerParams(
            dimension_semantics=("parallel",),
            vmem_limit_bytes=vmem_limit,
        ),
    )(feats)

    # ---- pass 2: upper-triangular tile-pair table, serpentine ordered.
    pairs = []
    for i in range(nt):
        js = range(i, nt) if (i % 2 == 0) else range(nt - 1, i - 1, -1)
        for j in js:
            pairs.append((i, j))
    pairs = np.asarray(pairs, dtype=np.int32).reshape(-1, 2)
    num_pairs = pairs.shape[0]
    row_tbl = jnp.asarray(pairs[:, 0])        # 1-D SMEM tables (minimal padding)
    col_tbl = jnp.asarray(pairs[:, 1])

    kernel = functools.partial(
        _opl_tile_kernel, batch=B, tile_b=tb, needs_pad=needs_pad)

    partials = pl.pallas_call(
        kernel,
        out_shape=jax.ShapeDtypeStruct((num_pairs, 8, tb), jnp.float32),
        grid_spec=pltpu.PrefetchScalarGridSpec(
            num_scalar_prefetch=2,
            grid=(num_pairs,),
            in_specs=[
                pl.BlockSpec((tb, D), lambda t, r, c: (r[t], 0)),   # fi
                pl.BlockSpec((tb, D), lambda t, r, c: (c[t], 0)),   # fj
                pl.BlockSpec((tb, 1), lambda t, r, c: (r[t], 0)),   # li
                pl.BlockSpec((1, tb), lambda t, r, c: (0, c[t])),   # lj (transposed)
            ],
            out_specs=pl.BlockSpec((1, 8, tb), lambda t, r, c: (t, 0, 0)),
        ),
        compiler_params=pltpu.CompilerParams(
            dimension_semantics=("parallel",),    # per-tile outputs, no carried state
            vmem_limit_bytes=vmem_limit,
        ),
    )(row_tbl, col_tbl, feat_norm, feat_norm, labels_col, labels_row)

    # ---- tiny final reduction + loss (gamma outside the kernel: no retrace).
    pos_sum = jnp.sum(partials[:, 0, :])
    neg_sum = jnp.sum(partials[:, 1, :])
    pos_cnt = jnp.sum(partials[:, 2, :])
    bf = jnp.float32(B)
    neg_cnt = bf * bf - pos_cnt - bf            # all pairs - same-label - diagonal
    pos_mean = pos_sum / (pos_cnt + 1e-6)
    neg_mean = neg_sum / (neg_cnt + 1e-6)
    return 1.0 - pos_mean + gamma * neg_mean


def _reference(features, labels, gamma=0.5):
    # pure-JAX reference for sanity checking
    f = features.astype(jnp.float32)
    f = f / jnp.maximum(jnp.linalg.norm(f, axis=1, keepdims=True), 1e-12)
    lab = labels[:, None]
    mask = lab == lab.T
    eye = jnp.eye(mask.shape[0], dtype=bool)
    mask_pos = jnp.where(mask & ~eye, 1.0, 0.0)
    mask_neg = jnp.where(~mask, 1.0, 0.0)
    dot = f @ f.T
    pos = jnp.sum(mask_pos * dot) / (jnp.sum(mask_pos) + 1e-6)
    neg = jnp.sum(mask_neg * dot) / (jnp.sum(mask_neg) + 1e-6)
    return 1.0 - pos + gamma * neg


if __name__ == "__main__":
    key = jax.random.PRNGKey(0)
    k1, k2, k3, k4 = jax.random.split(key, 4)

    # 1) Small shape, f32 end-to-end (tight tolerance): single-tile path.
    B, D = 8, 32
    features = jax.random.normal(k1, (B, D), dtype=jnp.float32)
    labels = jax.random.randint(k2, (B,), 0, 4, dtype=jnp.int32)
    loss = jax.block_until_ready(
        orthogonal_projection_loss(features, labels, gamma=0.5,
                                   norm_dtype=jnp.float32))
    ref = _reference(features, labels, gamma=0.5)
    assert jnp.allclose(loss, ref, atol=1e-5, rtol=1e-4), (loss, ref)

    # 2) Multi-tile triangular grid + batch padding, f32 path (tight tol).
    B2, D2 = 300, 64
    features2 = jax.random.normal(k3, (B2, D2), dtype=jnp.float32)
    labels2 = jax.random.randint(k4, (B2,), 0, 5, dtype=jnp.int32)
    loss2 = jax.block_until_ready(
        orthogonal_projection_loss(features2, labels2, gamma=0.5, tile_b=128,
                                   norm_dtype=jnp.float32))
    ref2 = _reference(features2, labels2, gamma=0.5)
    assert jnp.allclose(loss2, ref2, atol=1e-5, rtol=1e-4), (loss2, ref2)

    # 3) Default bf16 normalized-feature / bf16-MXU path (looser tolerance).
    loss3 = jax.block_until_ready(
        orthogonal_projection_loss(features2, labels2, gamma=0.5, tile_b=128))
    assert jnp.allclose(loss3, ref2, atol=2e-2, rtol=2e-2), (loss3, ref2)

    print("KERNEL_OK")
</pallas_src>

<mosaic_0001>
module attributes {stable_mosaic.version = 11 : i64} {
  func.func @_normalize_kernel(%arg0: i32, %arg1: memref<8x32xf32, #tpu.memory_space<vmem>>, %arg2: memref<8x32xf32, #tpu.memory_space<vmem>>) attributes {dimension_semantics = [#tpu.dimension_semantics<parallel>], iteration_bounds = array<i64: 1>, scalar_prefetch = 0 : i64, scratch_operands = 0 : i64, tpu.core_type = #tpu.core_type<tc>, window_params = [{transform_indices = @transform_0, window_bounds = array<i64: 8, 32>}, {transform_indices = @transform_1, window_bounds = array<i64: 8, 32>}]} {
    %c0 = arith.constant 0 : index
    %c0_0 = arith.constant 0 : index
    %0 = vector.load %arg1[%c0, %c0_0] : memref<8x32xf32, #tpu.memory_space<vmem>>, vector<8x32xf32>
    %1 = arith.mulf %0, %0 : vector<8x32xf32>
    %cst = arith.constant dense<0.000000e+00> : vector<8xf32>
    %2 = vector.multi_reduction <add>, %1, %cst [1] : vector<8x32xf32> to vector<8xf32>
    %3 = vector.shape_cast %2 : vector<8xf32> to vector<8x1xf32>
    %cst_1 = arith.constant 1.000000e-24 : f32
    %4 = vector.broadcast %cst_1 : f32 to vector<8x1xf32>
    %5 = arith.maximumf %3, %4 : vector<8x1xf32>
    %6 = math.rsqrt %5 : vector<8x1xf32>
    %7 = vector.broadcast %6 : vector<8x1xf32> to vector<8x32xf32>
    %8 = arith.mulf %0, %7 : vector<8x32xf32>
    %c0_2 = arith.constant 0 : index
    %c0_3 = arith.constant 0 : index
    %9 = vector.load %arg2[%c0_2, %c0_3] : memref<8x32xf32, #tpu.memory_space<vmem>>, vector<8x32xf32>
    tpu.vector_store %arg2[%c0_2, %c0_3], %8 {strides = array<i32>} : memref<8x32xf32, #tpu.memory_space<vmem>>, vector<8x32xf32>,
    return
  }
  func.func @transform_0(%arg0: i32) -> (i32, i32) {
    %c0_i32 = arith.constant 0 : i32
    %c0_i32_0 = arith.constant 0 : i32
    return %arg0, %c0_i32 : i32, i32
  }
  func.func @transform_1(%arg0: i32) -> (i32, i32) {
    %c0_i32 = arith.constant 0 : i32
    %c0_i32_0 = arith.constant 0 : i32
    return %arg0, %c0_i32 : i32, i32
  }
}

</mosaic_0001>

<llo_original>
// kernel: tpu_custom_call.1
$region0: #{tpu_custom_call.1}
  #allocation0 [shape = 'u32[]', space=smem, size = 0x4, offset = 0x4, fixed_abs, tag = 'smem constant byte address 0x4 - core index']
  #allocation1 [shape = 'u32[144,128]{1,0:T(1,128)}', space=vmem, size = 0x12000, scoped, tag = 'internal scratch']
  %s0 = inlined_call_operand.hbm [shape: f32[8,32], index: 0, kind: input, shape index: {}]
  %s1 = inlined_call_operand.hbm [shape: f32[8,32], index: 1, kind: output, shape index: {}]
  %s2 = sld [smem:[#allocation0]]
  $region18: #{tpu_custom_call.1} parent=0
    _
  %s4 = ssub.s32 1, %s2
  %s5 = scalar_select 0, %s4, %s2
  $region1: #{tpu_custom_call.1} parent=0
    #allocation2 [shape = 'u8[4096]{0}', space=vmem, size = 0x1000, scoped, tag = 'input window, operand 0, single buffered']
    #allocation3 [shape = 's32[1]{0}', space=sflag, size = 0x4, scoped, tag = 'scoped memory for tpu_custom_call.1']
    #allocation4 [shape = 's32[1]{0}', space=sflag, size = 0x4, scoped, tag = 'scoped memory for tpu_custom_call.1']
    #allocation5 [shape = 'u8[4096]{0}', space=vmem, size = 0x1000, scoped, tag = 'output window, operand 0, single buffered']
    %6 = vsyncpa [#allocation3], 0
    %7 = vsyncpa [#allocation4], 0
    // Predicated region
    $region2: #{tpu_custom_call.1} parent=1 // pred_check
      _
    $region3: #{tpu_custom_call.1} parent=1 // pred_check_branch
      %9 = sbr.rel (0) target = $region5
    $region4: #{tpu_custom_call.1} parent=1 // pred_region
      %s11 = ssub.s32 128, 128
      %12 = vsyncadd [#allocation3], %s11
      %s14 = sshll.u32 [#allocation2], 4
      %s15 = int_to_ptr.vmem [resolvable:$true] %s14
      %17 = dma.hbm_to_vmem [thread:$0]  %s0, 128, %s15, [#allocation3]
    $region5: #{tpu_custom_call.1} parent=1 // pred_fallthru
      _
    // Predicated region
    $region6: #{tpu_custom_call.1} parent=1 // pred_check
      _
    $region7: #{tpu_custom_call.1} parent=1 // pred_check_branch
      %19 = sbr.rel (0) target = $region9
    $region8: #{tpu_custom_call.1} parent=1 // pred_region
      %20 = dma.done [#allocation3], 128
    $region9: #{tpu_custom_call.1} parent=1 // pred_fallthru
      _
    %v21 = vld [vmem:[#allocation2] sm:$0xff]
    %v22 = vmul.f32 %v21, %v21
    %vm23 = vcmask 261120
    %v24 = vsel %vm23, %v22, 0.0
    %25 = vadd.xlane.f32.xlu0 %v24
    %v26 = vpop.xlane.xlu0 %25
    %v27 = vmax.f32 %v26, 1e-24
    %v28 = vrsqrt.pop %v27
    %v29 = vmul.f32 %v21, %v28
    %30 = vst.msk [vmem:[#allocation5] sm:$0xff] %vm23, %v29
    // Predicated region
    $region10: #{tpu_custom_call.1} parent=1 // pred_check
      _
    $region11: #{tpu_custom_call.1} parent=1 // pred_check_branch
      %32 = sbr.rel (0) target = $region13
    $region12: #{tpu_custom_call.1} parent=1 // pred_region
      %s34 = ssub.s32 128, 128
      %35 = vsyncadd [#allocation4], %s34
      %s37 = sshll.u32 [#allocation5], 4
      %s38 = int_to_ptr.vmem [resolvable:$true] %s37
      %40 = dma.vmem_to_hbm [thread:$0]  %s38, 128, %s1, [#allocation4]
    $region13: #{tpu_custom_call.1} parent=1 // pred_fallthru
      _
    // Predicated region
    $region14: #{tpu_custom_call.1} parent=1 // pred_check
      _
    $region15: #{tpu_custom_call.1} parent=1 // pred_check_branch
      %42 = sbr.rel (0) target = $region17
    $region16: #{tpu_custom_call.1} parent=1 // pred_region
      %43 = dma.done [#allocation4], 128
    $region17: #{tpu_custom_call.1} parent=1 // pred_fallthru
      _
    %44 = vsyncpa [#allocation3], 1
    %45 = vsyncpa [#allocation4], 1

</llo_original>
